<compile_context>
chip_gen: v5e
topology: v5e:2x2
jax: 0.10.0
libtpu: 0.0.40
codegen_flags: <defaults>
</compile_context>

<pallas_src>
import math

import jax
import jax.numpy as jnp
from jax.experimental import pallas as pl
from jax.experimental.pallas import tpu as pltpu


def _gelu_tanh(x):
    # GELU with tanh approximation (matches nn.GELU(approximate='tanh')).
    c = math.sqrt(2.0 / math.pi)
    return 0.5 * x * (1.0 + jnp.tanh(c * (x + 0.044715 * x * x * x)))


def _round_up(a, b):
    return ((a + b - 1) // b) * b


# ----------------------------------------------------------------------------
# Kernels
# ----------------------------------------------------------------------------

def _mlp_kernel_out_acc(x_ref, w1_ref, b1_ref, w2_ref, b2_ref, o_ref):
    """f32-output variant: o_ref (resident across k) doubles as accumulator."""
    k = pl.program_id(1)

    h = jnp.dot(x_ref[...], w1_ref[...], preferred_element_type=jnp.float32)
    h = _gelu_tanh(h + b1_ref[...])                       # f32 bias + GELU (EUP)
    part = jnp.dot(h.astype(w2_ref.dtype), w2_ref[...],
                   preferred_element_type=jnp.float32)

    @pl.when(k == 0)
    def _():
        o_ref[...] = part + b2_ref[...]                    # fold b2 into first partial

    @pl.when(k > 0)
    def _():
        o_ref[...] += part


def _mlp_kernel_scratch_acc(x_ref, w1_ref, b1_ref, w2_ref, b2_ref, o_ref, acc_ref):
    """Generic variant (non-f32 output): accumulate in f32 VMEM scratch."""
    k = pl.program_id(1)

    h = jnp.dot(x_ref[...], w1_ref[...], preferred_element_type=jnp.float32)
    h = _gelu_tanh(h + b1_ref[...])
    part = jnp.dot(h.astype(w2_ref.dtype), w2_ref[...],
                   preferred_element_type=jnp.float32)

    @pl.when(k == 0)
    def _():
        acc_ref[...] = part + b2_ref[...]

    @pl.when(k > 0)
    def _():
        acc_ref[...] += part

    @pl.when(k == pl.num_programs(1) - 1)
    def _():
        o_ref[...] = acc_ref[...].astype(o_ref.dtype)


# ----------------------------------------------------------------------------
# Tiling / budget helpers
# ----------------------------------------------------------------------------

def _vmem_budget_bytes():
    """Per-TensorCore VMEM budget: physical capacity minus ~20% margin
    (≈104 MiB on v5e/v6e with 128 MiB, ≈52 MiB on v7x with 64 MiB)."""
    cap = 0
    try:
        cap = int(pltpu.get_tpu_info().vmem_capacity_bytes)
    except Exception:
        cap = 0
    if cap <= 0:
        kind = ""
        try:
            kind = jax.devices()[0].device_kind.lower()
        except Exception:
            pass
        cap = (64 if "7" in kind else 128) * 2**20
    return int(cap * 0.81)


def _vmem_bytes(tm, th, E, x_isz, o_isz, w1_isz, w2_isz, acc_in_out, weight_bufs):
    b = 2 * tm * E * x_isz                                  # x tile (double-buffered)
    b += 2 * tm * E * o_isz                                 # out tile (double-buffered)
    b += weight_bufs * (E * th * w1_isz + th * 4)           # W1 tile + b1 (f32)
    b += weight_bufs * (th * E * w2_isz + E * 4)            # W2 tile + b2 (f32)
    if not acc_in_out:
        b += tm * E * 4                                     # f32 accumulator scratch
    return b


def _pick_th(H, E, w1_isz, w2_isz, budget, th_req):
    # Explicit, valid request wins.
    if (th_req is not None and th_req > 0 and H % th_req == 0
            and (th_req % 128 == 0 or th_req == H)):
        return int(th_req)
    # Keep both weights fully VMEM-resident when they fit comfortably:
    # block index then never changes => Pallas never re-DMAs them.
    if E * H * (w1_isz + w2_isz) <= budget // 3:
        return H
    # Stream: largest 128-aligned divisor of H (capped at 2048) whose
    # double-buffered tiles fit half the budget.
    divs = [d for d in range(128, min(H, 2048) + 1, 128) if H % d == 0]
    for d in reversed(divs):
        if 2 * E * d * (w1_isz + w2_isz) <= budget // 2:
            return d
    if divs:
        return divs[0]
    return H  # awkward H with no 128-aligned divisor: tm will shrink to fit


def _pick_tm(M, E, th, x_isz, o_isz, w1_isz, w2_isz, acc_in_out, weight_bufs,
             budget, tm_req, row_align):
    tm = max(row_align, min(int(tm_req), _round_up(M, row_align)))
    tm = _round_up(tm, row_align)
    # Keep >=2 row tiles so the "parallel" axis can shard across TensorCores.
    if M > row_align and _round_up(M, tm) // tm < 2:
        tm = _round_up(-(-M // 2), row_align)
    # Shrink until the VMEM estimate fits the per-generation budget.
    while tm > row_align and _vmem_bytes(tm, th, E, x_isz, o_isz, w1_isz, w2_isz,
                                         acc_in_out, weight_bufs) > budget:
        tm = _round_up(tm // 2, row_align)
    return tm


# ----------------------------------------------------------------------------
# Wrapper
# ----------------------------------------------------------------------------

def mlp_forward(x, w1, b1, w2, b2, *, tm=1024, th=None, compute_dtype=None):
    """x: (B, S, E); w1: (E, H); b1: (H,); w2: (H, E); b2: (E,).

    compute_dtype: optionally cast x/W1/W2 (e.g. jnp.bfloat16) for full-rate
    MXU + halved weight DMA; accumulation and bias+GELU stay f32.
    """
    B, S, E = x.shape
    E2, H = w1.shape
    assert E2 == E and w2.shape == (H, E) and b1.shape == (H,) and b2.shape == (E,)

    out_dtype = x.dtype                      # module semantics: output dtype == input dtype
    if compute_dtype is not None:
        x = x.astype(compute_dtype)
        w1 = w1.astype(compute_dtype)
        w2 = w2.astype(compute_dtype)

    x_isz = jnp.dtype(x.dtype).itemsize
    o_isz = jnp.dtype(out_dtype).itemsize
    w1_isz = jnp.dtype(w1.dtype).itemsize
    w2_isz = jnp.dtype(w2.dtype).itemsize

    budget = _vmem_budget_bytes()
    acc_in_out = jnp.dtype(out_dtype) == jnp.dtype(jnp.float32)

    th = _pick_th(H, E, w1_isz, w2_isz, budget, th)
    num_k = H // th
    # 3-deep weight pipeline only when streaming with several k steps and
    # VMEM headroom exists (v5e/v6e 128 MiB parts) — never on v7x's 64 MiB.
    weight_bufs = 3 if (th < H and num_k >= 3 and budget >= 96 * 2**20) else 2

    # Sublane packing: 8 rows/f32, 16/bf16, 32/int8 per packed tile.
    row_align = max(8, 32 // min(x_isz, o_isz))
    M = B * S
    tm = _pick_tm(M, E, th, x_isz, o_isz, w1_isz, w2_isz, acc_in_out, weight_bufs,
                  budget, tm, row_align)
    M_pad = _round_up(M, tm)

    x2 = x.reshape(M, E)
    if M_pad != M:
        x2 = jnp.pad(x2, ((0, M_pad - M), (0, 0)))

    # Biases pre-cast to the f32 accumulate dtype once, outside the kernel.
    b1_2 = b1.reshape(1, H).astype(jnp.float32)
    b2_2 = b2.reshape(1, E).astype(jnp.float32)

    grid = (M_pad // tm, num_k)

    def _weight_spec(shape, index_map):
        if weight_bufs > 2:
            try:
                return pl.BlockSpec(shape, index_map,
                                    pipeline_mode=pl.Buffered(weight_bufs))
            except Exception:          # fall back if pipeline_mode unsupported
                pass
        return pl.BlockSpec(shape, index_map)

    in_specs = [
        pl.BlockSpec((tm, E), lambda i, k: (i, 0)),      # x row tile
        _weight_spec((E, th), lambda i, k: (0, k)),      # W1 hidden tile
        pl.BlockSpec((1, th), lambda i, k: (0, k)),      # b1 hidden tile (f32)
        _weight_spec((th, E), lambda i, k: (k, 0)),      # W2 hidden tile
        pl.BlockSpec((1, E), lambda i, k: (0, 0)),       # b2 (f32)
    ]
    out_specs = pl.BlockSpec((tm, E), lambda i, k: (i, 0))

    kernel = _mlp_kernel_out_acc if acc_in_out else _mlp_kernel_scratch_acc
    scratch = [] if acc_in_out else [pltpu.VMEM((tm, E), jnp.float32)]

    vmem_est = _vmem_bytes(tm, th, E, x_isz, o_isz, w1_isz, w2_isz,
                           acc_in_out, weight_bufs)
    vmem_limit = int(min(budget, vmem_est + (16 << 20)))   # cushion for Mosaic scratch

    num_row_tiles = M_pad // tm
    weight_streams = 1 if th == H else num_row_tiles        # th==H => weights fetched once, ever
    cost = pl.CostEstimate(
        flops=4 * M_pad * E * H,                            # two (M,E,H) matmuls
        transcendentals=M_pad * H,                          # tanh in GELU
        bytes_accessed=int(M_pad * E * (x_isz + o_isz)
                           + weight_streams * (E * H * w1_isz + H * E * w2_isz)
                           + H * 4 + E * 4),
    )

    out = pl.pallas_call(
        kernel,
        out_shape=jax.ShapeDtypeStruct((M_pad, E), out_dtype),
        grid_spec=pltpu.PrefetchScalarGridSpec(
            num_scalar_prefetch=0,
            grid=grid,
            in_specs=in_specs,
            out_specs=out_specs,
            scratch_shapes=scratch,
        ),
        compiler_params=pltpu.CompilerParams(
            dimension_semantics=("parallel", "arbitrary"),
            vmem_limit_bytes=vmem_limit,
        ),
        cost_estimate=cost,
    )(x2, w1, b1_2, w2, b2_2)

    if M_pad != M:
        out = out[:M]
    return out.reshape(B, S, E)


def mlp_reference(x, w1, b1, w2, b2):
    h = _gelu_tanh(jnp.dot(x, w1) + b1)
    return jnp.dot(h, w2) + b2


if __name__ == "__main__":
    # Small shapes consistent with the module: (batch, seq, embed_dim), H = 4*E.
    B, S, E = 2, 8, 128
    H = 4 * E

    key = jax.random.PRNGKey(0)
    kx, k1, k2, k3, k4 = jax.random.split(key, 5)

    x = jax.random.normal(kx, (B, S, E), dtype=jnp.float32)

    # Deterministic init mirroring nn.Linear's U(-1/sqrt(fan_in), 1/sqrt(fan_in)).
    bound1 = 1.0 / math.sqrt(E)
    bound2 = 1.0 / math.sqrt(H)
    w1 = jax.random.uniform(k1, (E, H), jnp.float32, -bound1, bound1)  # fc_layer.weight.T
    b1 = jax.random.uniform(k2, (H,), jnp.float32, -bound1, bound1)    # fc_layer.bias
    w2 = jax.random.uniform(k3, (H, E), jnp.float32, -bound2, bound2)  # projection_layer.weight.T
    b2 = jax.random.uniform(k4, (E,), jnp.float32, -bound2, bound2)    # projection_layer.bias

    ref = mlp_reference(x, w1, b1, w2, b2)

    # 1) Auto tiling: weights fit VMEM -> th=H (single k step), f32 output
    #    accumulates directly into o_ref (no scratch).
    out = jax.block_until_ready(mlp_forward(x, w1, b1, w2, b2))
    assert out.shape == (B, S, E)
    assert jnp.allclose(out, ref, atol=1e-4, rtol=1e-4)

    # 2) Forced hidden tiling: th=128 -> 4 accumulation steps over the k axis
    #    (exercises the fold-b2-into-first-partial accumulate path).
    out2 = jax.block_until_ready(mlp_forward(x, w1, b1, w2, b2, th=128))
    assert jnp.allclose(out2, ref, atol=1e-4, rtol=1e-4)

    # 3) bf16 operands with bf16 output (scratch-accumulator path, bf16 MXU rate).
    xb = x.astype(jnp.bfloat16)
    w1b, w2b = w1.astype(jnp.bfloat16), w2.astype(jnp.bfloat16)
    out3 = jax.block_until_ready(mlp_forward(xb, w1b, b1, w2b, b2, th=128))
    ref3 = mlp_reference(xb.astype(jnp.float32), w1b.astype(jnp.float32), b1,
                         w2b.astype(jnp.float32), b2)
    assert out3.dtype == jnp.bfloat16
    assert jnp.allclose(out3.astype(jnp.float32), ref3, atol=1e-1, rtol=1e-1)

    print("KERNEL_OK")
</pallas_src>

<mosaic_0001>
module attributes {stable_mosaic.version = 11 : i64} {
  func.func @_mlp_kernel_out_acc(%arg0: i32, %arg1: i32, %arg2: memref<8x128xf32, #tpu.memory_space<vmem>>, %arg3: memref<128x512xf32, #tpu.memory_space<vmem>>, %arg4: memref<1x512xf32, #tpu.memory_space<vmem>>, %arg5: memref<512x128xf32, #tpu.memory_space<vmem>>, %arg6: memref<1x128xf32, #tpu.memory_space<vmem>>, %arg7: memref<8x128xf32, #tpu.memory_space<vmem>>) attributes {dimension_semantics = [#tpu.dimension_semantics<parallel>, #tpu.dimension_semantics<arbitrary>], iteration_bounds = array<i64: 2, 1>, scalar_prefetch = 0 : i64, scratch_operands = 0 : i64, tpu.core_type = #tpu.core_type<tc>, window_params = [{transform_indices = @transform_0, window_bounds = array<i64: 8, 128>}, {transform_indices = @transform_1, window_bounds = array<i64: 128, 512>}, {transform_indices = @transform_2, window_bounds = array<i64: 1, 512>}, {transform_indices = @transform_3, window_bounds = array<i64: 512, 128>}, {pipeline_mode = #tpu.pipeline_mode<synchronous>, transform_indices = @transform_4, window_bounds = array<i64: 1, 128>}, {transform_indices = @transform_5, window_bounds = array<i64: 8, 128>}]} {
    %c0 = arith.constant 0 : index
    %c0_0 = arith.constant 0 : index
    %0 = vector.load %arg2[%c0, %c0_0] : memref<8x128xf32, #tpu.memory_space<vmem>>, vector<8x128xf32>
    %c0_1 = arith.constant 0 : index
    %c0_2 = arith.constant 0 : index
    %1 = vector.load %arg3[%c0_1, %c0_2] : memref<128x512xf32, #tpu.memory_space<vmem>>, vector<128x512xf32>
    %cst = arith.constant dense<0.000000e+00> : vector<8x512xf32>
    %2 = tpu.matmul %0, %1, %cst {dimension_numbers = #tpu.dot_dimension_numbers<[1], [0], [0], [1], [0, 0, 1, 1], [], []>} : vector<8x128xf32>, vector<128x512xf32>, vector<8x512xf32> -> vector<8x512xf32>
    %c0_3 = arith.constant 0 : index
    %c0_4 = arith.constant 0 : index
    %3 = vector.load %arg4[%c0_3, %c0_4] : memref<1x512xf32, #tpu.memory_space<vmem>>, vector<1x512xf32>
    %4 = vector.broadcast %3 : vector<1x512xf32> to vector<8x512xf32>
    %5 = arith.addf %2, %4 : vector<8x512xf32>
    %cst_5 = arith.constant 5.000000e-01 : f32
    %6 = vector.broadcast %cst_5 : f32 to vector<8x512xf32>
    %7 = arith.mulf %6, %5 : vector<8x512xf32>
    %cst_6 = arith.constant 4.471500e-02 : f32
    %8 = vector.broadcast %cst_6 : f32 to vector<8x512xf32>
    %9 = arith.mulf %8, %5 : vector<8x512xf32>
    %10 = arith.mulf %9, %5 : vector<8x512xf32>
    %11 = arith.mulf %10, %5 : vector<8x512xf32>
    %12 = arith.addf %5, %11 : vector<8x512xf32>
    %cst_7 = arith.constant 0.797884583 : f32
    %13 = vector.broadcast %cst_7 : f32 to vector<8x512xf32>
    %14 = arith.mulf %13, %12 : vector<8x512xf32>
    %15 = math.tanh %14 : vector<8x512xf32>
    %cst_8 = arith.constant 1.000000e+00 : f32
    %16 = vector.broadcast %cst_8 : f32 to vector<8x512xf32>
    %17 = arith.addf %16, %15 : vector<8x512xf32>
    %18 = arith.mulf %7, %17 : vector<8x512xf32>
    %c0_9 = arith.constant 0 : index
    %c0_10 = arith.constant 0 : index
    %19 = vector.load %arg5[%c0_9, %c0_10] : memref<512x128xf32, #tpu.memory_space<vmem>>, vector<512x128xf32>
    %cst_11 = arith.constant dense<0.000000e+00> : vector<8x128xf32>
    %20 = tpu.matmul %18, %19, %cst_11 {dimension_numbers = #tpu.dot_dimension_numbers<[1], [0], [0], [1], [0, 0, 1, 1], [], []>} : vector<8x512xf32>, vector<512x128xf32>, vector<8x128xf32> -> vector<8x128xf32>
    %c0_i32 = arith.constant 0 : i32
    %21 = arith.cmpi eq, %arg1, %c0_i32 : i32
    %22 = arith.extui %21 : i1 to i32
    %c0_i32_12 = arith.constant 0 : i32
    %23 = arith.cmpi ne, %22, %c0_i32_12 : i32
    scf.if %23 {
      %c0_15 = arith.constant 0 : index
      %c0_16 = arith.constant 0 : index
      %27 = vector.load %arg6[%c0_15, %c0_16] : memref<1x128xf32, #tpu.memory_space<vmem>>, vector<1x128xf32>
      %28 = vector.broadcast %27 : vector<1x128xf32> to vector<8x128xf32>
      %29 = arith.addf %20, %28 : vector<8x128xf32>
      %c0_17 = arith.constant 0 : index
      %c0_18 = arith.constant 0 : index
      %30 = vector.load %arg7[%c0_17, %c0_18] : memref<8x128xf32, #tpu.memory_space<vmem>>, vector<8x128xf32>
      tpu.vector_store %arg7[%c0_17, %c0_18], %29 {strides = array<i32>} : memref<8x128xf32, #tpu.memory_space<vmem>>, vector<8x128xf32>,
    } else {
    }
    %c0_i32_13 = arith.constant 0 : i32
    %24 = arith.cmpi sgt, %arg1, %c0_i32_13 : i32
    %25 = arith.extui %24 : i1 to i32
    %c0_i32_14 = arith.constant 0 : i32
    %26 = arith.cmpi ne, %25, %c0_i32_14 : i32
    scf.if %26 {
      %c0_15 = arith.constant 0 : index
      %c0_16 = arith.constant 0 : index
      %27 = vector.load %arg7[%c0_15, %c0_16] : memref<8x128xf32, #tpu.memory_space<vmem>>, vector<8x128xf32>
      %28 = arith.addf %27, %20 : vector<8x128xf32>
      %c0_17 = arith.constant 0 : index
      %c0_18 = arith.constant 0 : index
      %29 = vector.load %arg7[%c0_17, %c0_18] : memref<8x128xf32, #tpu.memory_space<vmem>>, vector<8x128xf32>
      tpu.vector_store %arg7[%c0_17, %c0_18], %28 {strides = array<i32>} : memref<8x128xf32, #tpu.memory_space<vmem>>, vector<8x128xf32>,
    } else {
    }
    return
  }
  func.func @transform_0(%arg0: i32, %arg1: i32) -> (i32, i32) {
    %c0_i32 = arith.constant 0 : i32
    %c0_i32_0 = arith.constant 0 : i32
    return %arg0, %c0_i32 : i32, i32
  }
  func.func @transform_1(%arg0: i32, %arg1: i32) -> (i32, i32) {
    %c0_i32 = arith.constant 0 : i32
    %c0_i32_0 = arith.constant 0 : i32
    return %c0_i32, %arg1 : i32, i32
  }
  func.func @transform_2(%arg0: i32, %arg1: i32) -> (i32, i32) {
    %c0_i32 = arith.constant 0 : i32
    %c0_i32_0 = arith.constant 0 : i32
    return %c0_i32, %arg1 : i32, i32
  }
  func.func @transform_3(%arg0: i32, %arg1: i32) -> (i32, i32) {
    %c0_i32 = arith.constant 0 : i32
    %c0_i32_0 = arith.constant 0 : i32
    return %arg1, %c0_i32 : i32, i32
  }
  func.func @transform_4(%arg0: i32, %arg1: i32) -> (i32, i32) {
    %c0_i32 = arith.constant 0 : i32
    %c0_i32_0 = arith.constant 0 : i32
    %c0_i32_1 = arith.constant 0 : i32
    return %c0_i32, %c0_i32_0 : i32, i32
  }
  func.func @transform_5(%arg0: i32, %arg1: i32) -> (i32, i32) {
    %c0_i32 = arith.constant 0 : i32
    %c0_i32_0 = arith.constant 0 : i32
    return %arg0, %c0_i32 : i32, i32
  }
}

</mosaic_0001>

<llo_original>
// kernel: tpu_custom_call.1
$region0: #{tpu_custom_call.1}
  #allocation0 [shape = 'u32[]', space=smem, size = 0x4, offset = 0x4, fixed_abs, tag = 'smem constant byte address 0x4 - core index']
  #allocation1 [shape = 'u32[72,128]{1,0:T(1,128)}', space=vmem, size = 0x9000, scoped, tag = 'internal scratch']
  %s0 = inlined_call_operand.hbm [shape: f32[16,128], index: 0, kind: input, shape index: {}]
  %s1 = inlined_call_operand.hbm [shape: f32[128,512], index: 1, kind: input, shape index: {}]
  %s2 = inlined_call_operand.hbm [shape: f32[1,512], index: 2, kind: input, shape index: {}]
  %s3 = inlined_call_operand.hbm [shape: f32[512,128], index: 3, kind: input, shape index: {}]
  %s4 = inlined_call_operand.vmem [shape: f32[1,128], index: 4, kind: input, shape index: {}]
  %s5 = inlined_call_operand.hbm [shape: f32[16,128], index: 5, kind: output, shape index: {}]
  %s6 = sld [smem:[#allocation0]]
  $region77: #{tpu_custom_call.1} parent=0
    _
  %s8 = ssub.s32 1, %s6
  %s9 = scalar_select 0, %s8, %s6
  $region1: #{tpu_custom_call.1} parent=0
    #allocation2 [shape = 'u8[8192]{0}', space=vmem, size = 0x2000, scoped, tag = 'input window, operand 0']
    #allocation3 [shape = 's32[2]{0}', space=sflag, size = 0x8, scoped, tag = 'scoped memory for tpu_custom_call.1']
    #allocation4 [shape = 's32[2]{0}', space=sflag, size = 0x8, scoped, tag = 'scoped memory for tpu_custom_call.1']
    #allocation5 [shape = 'u8[262144]{0}', space=vmem, size = 0x40000, scoped, tag = 'input window, operand 1, single buffered']
    #allocation6 [shape = 's32[1]{0}', space=sflag, size = 0x4, scoped, tag = 'scoped memory for tpu_custom_call.1']
    #allocation7 [shape = 'u8[2048]{0}', space=vmem, size = 0x800, scoped, tag = 'input window, operand 2, single buffered']
    #allocation8 [shape = 'u8[262144]{0}', space=vmem, size = 0x40000, scoped, tag = 'input window, operand 3, single buffered']
    #allocation9 [shape = 's32[1]{0}', space=sflag, size = 0x4, scoped, tag = 'scoped memory for tpu_custom_call.1']
    #allocation10 [shape = 'u8[8192]{0}', space=vmem, size = 0x2000, scoped, tag = 'output window, operand 0']
    %10 = vsyncpa [#allocation3], 0
    %s11 = scalar_lea.sflag [#allocation3], 1
    %12 = vsyncpa %s11, 0
    %13 = vsyncpa [#allocation6], 0
    %14 = vsyncpa [#allocation9], 0
    %15 = vsyncpa [#allocation4], 0
    %s16 = scalar_lea.sflag [#allocation4], 1
    %17 = vsyncpa %s16, 0
    loop: start=0, step=1, limit=4
    $region2: #{tpu_custom_call.1} parent=1 // loop_pre_header
      _
    $region3: #{tpu_custom_call.1} parent=1 // loop_header
      %s19 = sphi 0, %s23
      %p20 = scmp.ge.s32.totalorder %s19, 4
      %s26 = sphi 0, %s38
      %s27 = sphi 0, %s34
      %s28 = sphi 0, %s26
      %s29 = sphi 0, %s27
      %s30 = sphi 0, %s28
      %s31 = sphi 0, %s29
      %s41 = sphi 0, %s43
      %s44 = sphi 0, %s41
      %s45 = sphi 0, %s44
      %s61 = sphi 0, %s45
      %s67 = sphi 0, %s69
      %s70 = sphi 0, %s67
      %s71 = sphi 0, %s70
      %s87 = sphi 0, %s71
      %s93 = sphi 0, %s95
      %s96 = sphi 0, %s93
      %s97 = sphi 0, %s96
      %s113 = sphi 0, %s97
      %s119 = sphi 0, %s121
      %s122 = sphi 0, %s119
      %s123 = sphi 0, %s122
      %s139 = sphi 0, %s123
      %s143 = sphi 0, %s143
      %s145 = sphi 0, %s143
      %s146 = sphi 0, %s145
      %s160 = sphi 0, %s146
      %s166 = sphi 0, %s168
      %s169 = sphi 0, %s166
      %s170 = sphi 0, %s169
      %s186 = sphi 0, %s170
    $region4: #{tpu_custom_call.1} parent=1 // loop_header_branch
      %22 = sbr.rel (%p20) target = $region8
    $region5: #{tpu_custom_call.1} parent=1 // loop_body
      %s24 = ssub.s32 %s19, 1
      %s25 = ssub.s32 %s19, 2
      %s32 = sadd.s32 1, %s27
      %p33 = scmp.ge.s32.totalorder %s32, 1
      %s34 = scalar_select %p33, 0, %s32
      %s35 = sadd.s32 1, %s26
      %s36 = scalar_select %p33, %s35, %s26
      %p37 = scmp.ge.s32.totalorder %s36, 2
      %s38 = scalar_select %p37, 0, %s36
      %s39 = ssub.s32 %s26, %s38
      %p40 = scmp.eq.s32.totalorder %s39, 0
      %s42 = sadd.s32 %s41, 1
      %s43 = scalar_select %p40, %s41, %s42
      %p46 = pneg %p40
      %p47 = scmp.eq.s32.totalorder %s19, 1
      %p48 = por %p46, %p47
      %p49 = scmp.ne.s32.totalorder %s41, %s44
      %p50 = scmp.eq.s32.totalorder %s19, 0
      %p51 = por %p49, %p50
      %p52 = scmp.ne.s32.totalorder %s41, %s44
      %p53 = scmp.eq.s32.totalorder %s24, 1
      %p54 = por %p52, %p53
      %p55 = scmp.ne.s32.totalorder %s44, %s45
      %p56 = scmp.eq.s32.totalorder %s24, 0
      %p57 = por %p55, %p56
      %p58 = scmp.ne.s32.totalorder %s44, %s45
      %p59 = scmp.eq.s32.totalorder %s25, 1
      %p60 = por %p58, %p59
      %p62 = scmp.ne.s32.totalorder %s45, %s61
      %p63 = scmp.eq.s32.totalorder %s25, 0
      %p64 = por %p62, %p63
      %s65 = ssub.s32 %s27, %s34
      %p66 = scmp.eq.s32.totalorder %s65, 0
      %s68 = sadd.s32 %s67, 1
      %s69 = scalar_select %p66, %s67, %s68
      %p72 = pneg %p66
      %p73 = scmp.eq.s32.totalorder %s19, 1
      %p74 = por %p72, %p73
      %p75 = scmp.ne.s32.totalorder %s67, %s70
      %p76 = scmp.eq.s32.totalorder %s19, 0
      %p77 = por %p75, %p76
      %p78 = scmp.ne.s32.totalorder %s67, %s70
      %p79 = scmp.eq.s32.totalorder %s24, 1
      %p80 = por %p78, %p79
      %p81 = scmp.ne.s32.totalorder %s70, %s71
      %p82 = scmp.eq.s32.totalorder %s24, 0
      %p83 = por %p81, %p82
      %p84 = scmp.ne.s32.totalorder %s70, %s71
      %p85 = scmp.eq.s32.totalorder %s25, 1
      %p86 = por %p84, %p85
      %p88 = scmp.ne.s32.totalorder %s71, %s87
      %p89 = scmp.eq.s32.totalorder %s25, 0
      %p90 = por %p88, %p89
      %s91 = ssub.s32 %s27, %s34
      %p92 = scmp.eq.s32.totalorder %s91, 0
      %s94 = sadd.s32 %s93, 1
      %s95 = scalar_select %p92, %s93, %s94
      %p98 = pneg %p92
      %p99 = scmp.eq.s32.totalorder %s19, 1
      %p100 = por %p98, %p99
      %p101 = scmp.ne.s32.totalorder %s93, %s96
      %p102 = scmp.eq.s32.totalorder %s19, 0
      %p103 = por %p101, %p102
      %p104 = scmp.ne.s32.totalorder %s93, %s96
      %p105 = scmp.eq.s32.totalorder %s24, 1
      %p106 = por %p104, %p105
      %p107 = scmp.ne.s32.totalorder %s96, %s97
      %p108 = scmp.eq.s32.totalorder %s24, 0
      %p109 = por %p107, %p108
      %p110 = scmp.ne.s32.totalorder %s96, %s97
      %p111 = scmp.eq.s32.totalorder %s25, 1
      %p112 = por %p110, %p111
      %p114 = scmp.ne.s32.totalorder %s97, %s113
      %p115 = scmp.eq.s32.totalorder %s25, 0
      %p116 = por %p114, %p115
      %s117 = ssub.s32 %s27, %s34
      %p118 = scmp.eq.s32.totalorder %s117, 0
      %s120 = sadd.s32 %s119, 1
      %s121 = scalar_select %p118, %s119, %s120
      %p124 = pneg %p118
      %p125 = scmp.eq.s32.totalorder %s19, 1
      %p126 = por %p124, %p125
      %p127 = scmp.ne.s32.totalorder %s119, %s122
      %p128 = scmp.eq.s32.totalorder %s19, 0
      %p129 = por %p127, %p128
      %p130 = scmp.ne.s32.totalorder %s119, %s122
      %p131 = scmp.eq.s32.totalorder %s24, 1
      %p132 = por %p130, %p131
      %p133 = scmp.ne.s32.totalorder %s122, %s123
      %p134 = scmp.eq.s32.totalorder %s24, 0
      %p135 = por %p133, %p134
      %p136 = scmp.ne.s32.totalorder %s122, %s123
      %p137 = scmp.eq.s32.totalorder %s25, 1
      %p138 = por %p136, %p137
      %p140 = scmp.ne.s32.totalorder %s123, %s139
      %p141 = scmp.eq.s32.totalorder %s25, 0
      %p142 = por %p140, %p141
      %s144 = sadd.s32 %s143, 1
      %p147 = scmp.eq.s32.totalorder %s19, 1
      %p148 = scmp.ne.s32.totalorder %s143, %s145
      %p149 = scmp.eq.s32.totalorder %s19, 0
      %p150 = por %p148, %p149
      %p151 = scmp.ne.s32.totalorder %s143, %s145
      %p152 = scmp.eq.s32.totalorder %s24, 1
      %p153 = por %p151, %p152
      %p154 = scmp.ne.s32.totalorder %s145, %s146
      %p155 = scmp.eq.s32.totalorder %s24, 0
      %p156 = por %p154, %p155
      %p157 = scmp.ne.s32.totalorder %s145, %s146
      %p158 = scmp.eq.s32.totalorder %s25, 1
      %p159 = por %p157, %p158
      %p161 = scmp.ne.s32.totalorder %s146, %s160
      %p162 = scmp.eq.s32.totalorder %s25, 0
      %p163 = por %p161, %p162
      %s164 = ssub.s32 %s26, %s38
      %p165 = scmp.eq.s32.totalorder %s164, 0
      %s167 = sadd.s32 %s166, 1
      %s168 = scalar_select %p165, %s166, %s167
      %p171 = pneg %p165
      %p172 = scmp.eq.s32.totalorder %s19, 1
      %p173 = por %p171, %p172
      %p174 = scmp.ne.s32.totalorder %s166, %s169
      %p175 = scmp.eq.s32.totalorder %s19, 0
      %p176 = por %p174, %p175
      %p177 = scmp.ne.s32.totalorder %s166, %s169
      %p178 = scmp.eq.s32.totalorder %s24, 1
      %p179 = por %p177, %p178
      %p180 = scmp.ne.s32.totalorder %s169, %s170
      %p181 = scmp.eq.s32.totalorder %s24, 0
      %p182 = por %p180, %p181
      %p183 = scmp.ne.s32.totalorder %s169, %s170
      %p184 = scmp.eq.s32.totalorder %s25, 1
      %p185 = por %p183, %p184
      %p187 = scmp.ne.s32.totalorder %s170, %s186
      %p188 = scmp.eq.s32.totalorder %s25, 0
      %p189 = por %p187, %p188
      %p190 = scmp.le.s32.totalorder 1, %s19
      %p191 = scmp.lt.s32.totalorder %s19, 3
      %p192 = pnand %p190, %p191
      %p193 = pneg %p192
      // Predicated region
      $region9: #{tpu_custom_call.1} parent=5 // pred_check
        _
      $region10: #{tpu_custom_call.1} parent=5 // pred_check_branch
        %195 = sbr.rel (%p192) target = $region12
      $region11: #{tpu_custom_call.1} parent=5 // pred_region
        %s196 = ssub.s32 %s19, 1
        // Predicated region
        $region13: #{tpu_custom_call.1} parent=11 // pred_check
          %p197 = pneg %p83
        $region14: #{tpu_custom_call.1} parent=11 // pred_check_branch
          %199 = sbr.rel (%p197) target = $region16
        $region15: #{tpu_custom_call.1} parent=11 // pred_region
          %s200 = smul.u32 4, %s29
          %202 = vsyncadd [#allocation6], 0
          %s203 = smul.addr %s200, 8
          %s204 = scalar_lea.hbm %s1, %s203
          %s205 = sshll.u32 %s204, 4
          %s206 = int_to_ptr.hbm [resolvable:$true] %s205
          %s207 = sshll.u32 [#allocation5], 4
          %s208 = int_to_ptr.vmem [resolvable:$true] %s207
          %213 = dma.hbm_to_vmem [thread:$0]  %s206, 8192, %s208, [#allocation6], 512, 512, 32
        $region16: #{tpu_custom_call.1} parent=11 // pred_fallthru
          _
        // Predicated region
        $region17: #{tpu_custom_call.1} parent=11 // pred_check
          %p214 = pneg %p109
        $region18: #{tpu_custom_call.1} parent=11 // pred_check_branch
          %216 = sbr.rel (%p214) target = $region20
        $region19: #{tpu_custom_call.1} parent=11 // pred_region
          %s217 = smul.u32 4, %s29
          %219 = vsyncadd [#allocation6], 0
          %s220 = scalar_lea.hbm %s2, %s217
          %s222 = sshll.u32 %s220, 4
          %s223 = int_to_ptr.hbm [resolvable:$true] %s222
          %s224 = sshll.u32 [#allocation7], 4
          %s225 = int_to_ptr.vmem [resolvable:$true] %s224
          %227 = dma.hbm_to_vmem [thread:$0]  %s223, 64, %s225, [#allocation6]
        $region20: #{tpu_custom_call.1} parent=11 // pred_fallthru
          _
        // Predicated region
        $region21: #{tpu_custom_call.1} parent=11 // pred_check
          %p228 = pneg %p135
        $region22: #{tpu_custom_call.1} parent=11 // pred_check_branch
          %230 = sbr.rel (%p228) target = $region24
        $region23: #{tpu_custom_call.1} parent=11 // pred_region
          %s231 = smul.u32 64, %s29
          %233 = vsyncadd [#allocation9], 0
          %s234 = smul.addr %s231, 8
          %s235 = scalar_lea.hbm %s3, %s234
          %s236 = sshll.u32 %s235, 4
          %s237 = int_to_ptr.hbm [resolvable:$true] %s236
          %s238 = sshll.u32 [#allocation8], 4
          %s239 = int_to_ptr.vmem [resolvable:$true] %s238
          %244 = dma.hbm_to_vmem [thread:$0]  %s237, 8192, %s239, [#allocation9], 128, 128, 8
        $region24: #{tpu_custom_call.1} parent=11 // pred_fallthru
          _
        // Predicated region
        $region25: #{tpu_custom_call.1} parent=11 // pred_check
          %p245 = pneg %p156
        $region26: #{tpu_custom_call.1} parent=11 // pred_check_branch
          %247 = sbr.rel (%p245) target = $region28
        $region27: #{tpu_custom_call.1} parent=11 // pred_region
          _
        $region28: #{tpu_custom_call.1} parent=11 // pred_fallthru
          _
      $region12: #{tpu_custom_call.1} parent=5 // pred_fallthru
        _
      %p248 = scmp.lt.s32.totalorder %s19, 2
      // Predicated region
      $region29: #{tpu_custom_call.1} parent=5 // pred_check
        %p249 = pneg %p248
      $region30: #{tpu_custom_call.1} parent=5 // pred_check_branch
        %251 = sbr.rel (%p249) target = $region32
      $region31: #{tpu_custom_call.1} parent=5 // pred_region
        // Predicated region
        $region33: #{tpu_custom_call.1} parent=31 // pred_check
          %p252 = pneg %p51
        $region34: #{tpu_custom_call.1} parent=31 // pred_check_branch
          %254 = sbr.rel (%p252) target = $region36
        $region35: #{tpu_custom_call.1} parent=31 // pred_region
          %s255 = sand.u32 %s41, 1
          %s256 = scalar_lea.sflag [#allocation3], %s255
          %s257 = sand.u32 %s41, 1
          %s258 = smul.addr %s257, 8
          %s259 = scalar_lea.vmem [#allocation2], %s258
          %261 = vsyncadd %s256, 0
          %s262 = smul.addr %s26, 8
          %s263 = scalar_lea.hbm %s0, %s262
          %s265 = sshll.u32 %s263, 4
          %s266 = int_to_ptr.hbm [resolvable:$true] %s265
          %s267 = sshll.u32 %s259, 4
          %s268 = int_to_ptr.vmem [resolvable:$true] %s267
          %270 = dma.hbm_to_vmem [thread:$0]  %s266, 128, %s268, %s256
        $region36: #{tpu_custom_call.1} parent=31 // pred_fallthru
          _
      $region32: #{tpu_custom_call.1} parent=5 // pred_fallthru
        _
      %p271 = scmp.le.s32.totalorder 1, %s19
      %p272 = scmp.lt.s32.totalorder %s19, 3
      %p273 = pnand %p271, %p272
      %p274 = pneg %p273
      // Predicated region
      $region37: #{tpu_custom_call.1} parent=5 // pred_check
        _
      $region38: #{tpu_custom_call.1} parent=5 // pred_check_branch
        %276 = sbr.rel (%p273) target = $region40
      $region39: #{tpu_custom_call.1} parent=5 // pred_region
        %s277 = ssub.s32 %s19, 1
        %s278 = sand.u32 %s44, 1
        %s279 = scalar_lea.sflag [#allocation3], %s278
        %s280 = sand.u32 %s44, 1
        %s281 = smul.addr %s280, 8
        %s282 = scalar_lea.vmem [#allocation2], %s281
        // Predicated region
        $region41: #{tpu_custom_call.1} parent=39 // pred_check
          %p283 = pneg %p57
        $region42: #{tpu_custom_call.1} parent=39 // pred_check_branch
          %285 = sbr.rel (%p283) target = $region44
        $region43: #{tpu_custom_call.1} parent=39 // pred_region
          %287 = dma.done %s279, 128
        $region44: #{tpu_custom_call.1} parent=39 // pred_fallthru
          _
        // Predicated region
        $region45: #{tpu_custom_call.1} parent=39 // pred_check
          %p288 = pneg %p83
        $region46: #{tpu_custom_call.1} parent=39 // pred_check_branch
          %290 = sbr.rel (%p288) target = $region48
        $region47: #{tpu_custom_call.1} parent=39 // pred_region
          %292 = dma.done [#allocation6], 8192
        $region48: #{tpu_custom_call.1} parent=39 // pred_fallthru
          _
        // Predicated region
        $region49: #{tpu_custom_call.1} parent=39 // pred_check
          %p293 = pneg %p109
        $region50: #{tpu_custom_call.1} parent=39 // pred_check_branch
          %295 = sbr.rel (%p293) target = $region52
        $region51: #{tpu_custom_call.1} parent=39 // pred_region
          %297 = dma.done [#allocation6], 64
        $region52: #{tpu_custom_call.1} parent=39 // pred_fallthru
          _
        // Predicated region
        $region53: #{tpu_custom_call.1} parent=39 // pred_check
          %p298 = pneg %p135
        $region54: #{tpu_custom_call.1} parent=39 // pred_check_branch
          %300 = sbr.rel (%p298) target = $region56
        $region55: #{tpu_custom_call.1} parent=39 // pred_region
          %302 = dma.done [#allocation9], 8192
        $region56: #{tpu_custom_call.1} parent=39 // pred_fallthru
          _
        %s303 = sand.u32 %s44, 1
        %s304 = scalar_lea.sflag [#allocation3], %s303
        %s305 = sand.u32 %s44, 1
        %s306 = smul.addr %s305, 8
        %s307 = scalar_lea.vmem [#allocation2], %s306
        %p308 = pneg %p57
        %p309 = pneg %p54
        %p310 = pneg %p83
        %p311 = pneg %p80
        %p312 = pneg %p109
        %p313 = pneg %p106
        %p314 = pneg %p135
        %p315 = pneg %p132
        %p316 = pneg %p156
        %p317 = pneg %p153
        %p318 = pneg %p182
        %p319 = pneg %p179
        %s320 = sand.u32 %s169, 1
        %s321 = scalar_lea.sflag [#allocation4], %s320
        %s322 = sand.u32 %s169, 1
        %s323 = smul.addr %s322, 8
        %s324 = scalar_lea.vmem [#allocation10], %s323
        %s325 = smul.u32 4, %s29
        %s326 = smul.u32 4, %s29
        %s327 = smul.u32 64, %s29
        %v328 = vld [vmem:[%s282] sm:$0xff]
        %v329 = vld [vmem:[#allocation5] sm:$0xff]
        %v330 = vld [vmem:[#allocation5 + $0x8] sm:$0xff]
        %v331 = vld [vmem:[#allocation5 + $0x10] sm:$0xff]
        %v332 = vld [vmem:[#allocation5 + $0x18] sm:$0xff]
        %v333 = vld [vmem:[#allocation5 + $0x20] sm:$0xff]
        %v334 = vld [vmem:[#allocation5 + $0x28] sm:$0xff]
        %v335 = vld [vmem:[#allocation5 + $0x30] sm:$0xff]
        %v336 = vld [vmem:[#allocation5 + $0x38] sm:$0xff]
        %v337 = vld [vmem:[#allocation5 + $0x40] sm:$0xff]
        %v338 = vld [vmem:[#allocation5 + $0x48] sm:$0xff]
        %v339 = vld [vmem:[#allocation5 + $0x50] sm:$0xff]
        %v340 = vld [vmem:[#allocation5 + $0x58] sm:$0xff]
        %v341 = vld [vmem:[#allocation5 + $0x60] sm:$0xff]
        %v342 = vld [vmem:[#allocation5 + $0x68] sm:$0xff]
        %v343 = vld [vmem:[#allocation5 + $0x70] sm:$0xff]
        %v344 = vld [vmem:[#allocation5 + $0x78] sm:$0xff]
        %v345 = vld [vmem:[#allocation5 + $0x80] sm:$0xff]
        %v346 = vld [vmem:[#allocation5 + $0x88] sm:$0xff]
        %v347 = vld [vmem:[#allocation5 + $0x90] sm:$0xff]
        %v348 = vld [vmem:[#allocation5 + $0x98] sm:$0xff]
        %v349 = vld [vmem:[#allocation5 + $0xa0] sm:$0xff]
        %v350 = vld [vmem:[#allocation5 + $0xa8] sm:$0xff]
        %v351 = vld [vmem:[#allocation5 + $0xb0] sm:$0xff]
        %v352 = vld [vmem:[#allocation5 + $0xb8] sm:$0xff]
        %v353 = vld [vmem:[#allocation5 + $0xc0] sm:$0xff]
        %v354 = vld [vmem:[#allocation5 + $0xc8] sm:$0xff]
        %v355 = vld [vmem:[#allocation5 + $0xd0] sm:$0xff]
        %v356 = vld [vmem:[#allocation5 + $0xd8] sm:$0xff]
        %v357 = vld [vmem:[#allocation5 + $0xe0] sm:$0xff]
        %v358 = vld [vmem:[#allocation5 + $0xe8] sm:$0xff]
        %v359 = vld [vmem:[#allocation5 + $0xf0] sm:$0xff]
        %v360 = vld [vmem:[#allocation5 + $0xf8] sm:$0xff]
        %v361 = vld [vmem:[#allocation5 + $0x100] sm:$0xff]
        %v362 = vld [vmem:[#allocation5 + $0x108] sm:$0xff]
        %v363 = vld [vmem:[#allocation5 + $0x110] sm:$0xff]
        %v364 = vld [vmem:[#allocation5 + $0x118] sm:$0xff]
        %v365 = vld [vmem:[#allocation5 + $0x120] sm:$0xff]
        %v366 = vld [vmem:[#allocation5 + $0x128] sm:$0xff]
        %v367 = vld [vmem:[#allocation5 + $0x130] sm:$0xff]
        %v368 = vld [vmem:[#allocation5 + $0x138] sm:$0xff]
        %v369 = vld [vmem:[#allocation5 + $0x140] sm:$0xff]
        %v370 = vld [vmem:[#allocation5 + $0x148] sm:$0xff]
        %v371 = vld [vmem:[#allocation5 + $0x150] sm:$0xff]
        %v372 = vld [vmem:[#allocation5 + $0x158] sm:$0xff]
        %v373 = vld [vmem:[#allocation5 + $0x160] sm:$0xff]
        %v374 = vld [vmem:[#allocation5 + $0x168] sm:$0xff]
        %v375 = vld [vmem:[#allocation5 + $0x170] sm:$0xff]
        %v376 = vld [vmem:[#allocation5 + $0x178] sm:$0xff]
        %v377 = vld [vmem:[#allocation5 + $0x180] sm:$0xff]
        %v378 = vld [vmem:[#allocation5 + $0x188] sm:$0xff]
        %v379 = vld [vmem:[#allocation5 + $0x190] sm:$0xff]
        %v380 = vld [vmem:[#allocation5 + $0x198] sm:$0xff]
        %v381 = vld [vmem:[#allocation5 + $0x1a0] sm:$0xff]
        %v382 = vld [vmem:[#allocation5 + $0x1a8] sm:$0xff]
        %v383 = vld [vmem:[#allocation5 + $0x1b0] sm:$0xff]
        %v384 = vld [vmem:[#allocation5 + $0x1b8] sm:$0xff]
        %v385 = vld [vmem:[#allocation5 + $0x1c0] sm:$0xff]
        %v386 = vld [vmem:[#allocation5 + $0x1c8] sm:$0xff]
        %v387 = vld [vmem:[#allocation5 + $0x1d0] sm:$0xff]
        %v388 = vld [vmem:[#allocation5 + $0x1d8] sm:$0xff]
        %v389 = vld [vmem:[#allocation5 + $0x1e0] sm:$0xff]
        %v390 = vld [vmem:[#allocation5 + $0x1e8] sm:$0xff]
        %v391 = vld [vmem:[#allocation5 + $0x1f0] sm:$0xff]
        %v392 = vld [vmem:[#allocation5 + $0x1f8] sm:$0xff]
        %v393 = vld [vmem:[#allocation7] sm:$0xf]
        %v395 = vperm.slane %v393, 0
        %v396 = vperm.slane %v393, 1
        %v397 = vperm.slane %v393, 2
        %v398 = vperm.slane %v393, 3
        %403 = vmatpush.msra.mxu0 %v389
        %404 = vmatpush.msra.mxu0 %v385
        %405 = vmatpush.msra.mxu0 %v381
        %406 = vmatpush.msra.mxu0 %v377
        %407 = vmatpush.msra.mxu0 %v373
        %408 = vmatpush.msra.mxu0 %v369
        %409 = vmatpush.msra.mxu0 %v365
        %410 = vmatpush.msra.mxu0 %v361
        %411 = vmatpush.msra.mxu0 %v357
        %412 = vmatpush.msra.mxu0 %v353
        %413 = vmatpush.msra.mxu0 %v349
        %414 = vmatpush.msra.mxu0 %v345
        %415 = vmatpush.msra.mxu0 %v341
        %416 = vmatpush.msra.mxu0 %v337
        %417 = vmatpush.msra.mxu0 %v333
        %418 = vmatpush.msra.mxu0 %v329
        %419 = vmatmul.f32.gmra.mxu0 %v328
        %v420 = vpop.f32.mrf.mxu0
        %v421 = vadd.f32 %v395, %v420
        %422 = vdwg.mxu0
        %423 = vmatpush.msra.mxu0 %v390
        %424 = vmatpush.msra.mxu0 %v386
        %425 = vmatpush.msra.mxu0 %v382
        %426 = vmatpush.msra.mxu0 %v378
        %427 = vmatpush.msra.mxu0 %v374
        %428 = vmatpush.msra.mxu0 %v370
        %429 = vmatpush.msra.mxu0 %v366
        %430 = vmatpush.msra.mxu0 %v362
        %431 = vmatpush.msra.mxu0 %v358
        %432 = vmatpush.msra.mxu0 %v354
        %433 = vmatpush.msra.mxu0 %v350
        %434 = vmatpush.msra.mxu0 %v346
        %435 = vmatpush.msra.mxu0 %v342
        %436 = vmatpush.msra.mxu0 %v338
        %437 = vmatpush.msra.mxu0 %v334
        %438 = vmatpush.msra.mxu0 %v330
        %439 = vmatmul.f32.gmra.mxu0 %v328
        %v440 = vpop.f32.mrf.mxu0
        %v441 = vadd.f32 %v396, %v440
        %442 = vdwg.mxu0
        %443 = vmatpush.msra.mxu0 %v391
        %444 = vmatpush.msra.mxu0 %v387
        %445 = vmatpush.msra.mxu0 %v383
        %446 = vmatpush.msra.mxu0 %v379
        %447 = vmatpush.msra.mxu0 %v375
        %448 = vmatpush.msra.mxu0 %v371
        %449 = vmatpush.msra.mxu0 %v367
        %450 = vmatpush.msra.mxu0 %v363
        %451 = vmatpush.msra.mxu0 %v359
        %452 = vmatpush.msra.mxu0 %v355
        %453 = vmatpush.msra.mxu0 %v351
        %454 = vmatpush.msra.mxu0 %v347
        %455 = vmatpush.msra.mxu0 %v343
        %456 = vmatpush.msra.mxu0 %v339
        %457 = vmatpush.msra.mxu0 %v335
        %458 = vmatpush.msra.mxu0 %v331
        %459 = vmatmul.f32.gmra.mxu0 %v328
        %v460 = vpop.f32.mrf.mxu0
        %v461 = vadd.f32 %v397, %v460
        %462 = vdwg.mxu0
        %463 = vmatpush.msra.mxu0 %v392
        %464 = vmatpush.msra.mxu0 %v388
        %465 = vmatpush.msra.mxu0 %v384
        %466 = vmatpush.msra.mxu0 %v380
        %467 = vmatpush.msra.mxu0 %v376
        %468 = vmatpush.msra.mxu0 %v372
        %469 = vmatpush.msra.mxu0 %v368
        %470 = vmatpush.msra.mxu0 %v364
        %471 = vmatpush.msra.mxu0 %v360
        %472 = vmatpush.msra.mxu0 %v356
        %473 = vmatpush.msra.mxu0 %v352
        %474 = vmatpush.msra.mxu0 %v348
        %475 = vmatpush.msra.mxu0 %v344
        %476 = vmatpush.msra.mxu0 %v340
        %477 = vmatpush.msra.mxu0 %v336
        %478 = vmatpush.msra.mxu0 %v332
        %479 = vmatmul.f32.gmra.mxu0 %v328
        %v480 = vpop.f32.mrf.mxu0
        %v481 = vadd.f32 %v398, %v480
        %482 = vdwg.mxu0
        %v483 = vmul.f32 %v421, 0.5
        %v484 = vmul.f32 %v441, 0.5
        %v485 = vmul.f32 %v461, 0.5
        %v486 = vmul.f32 %v481, 0.5
        %v487 = vmul.f32 %v421, 0.044715
        %v488 = vmul.f32 %v441, 0.044715
        %v489 = vmul.f32 %v461, 0.044715
        %v490 = vmul.f32 %v481, 0.044715
        %v491 = vmul.f32 %v487, %v421
        %v492 = vmul.f32 %v488, %v441
        %v493 = vmul.f32 %v489, %v461
        %v494 = vmul.f32 %v490, %v481
        %v495 = vmul.f32 %v491, %v421
        %v496 = vmul.f32 %v492, %v441
        %v497 = vmul.f32 %v493, %v461
        %v498 = vmul.f32 %v494, %v481
        %v499 = vadd.f32 %v421, %v495
        %v500 = vadd.f32 %v441, %v496
        %v501 = vadd.f32 %v461, %v497
        %v502 = vadd.f32 %v481, %v498
        %v503 = vmul.f32 %v499, 0.7978846
        %v504 = vmul.f32 %v500, 0.7978846
        %v505 = vmul.f32 %v501, 0.7978846
        %v506 = vmul.f32 %v502, 0.7978846
        %v507 = vtanh.pop %v503
        %v508 = vtanh.pop %v504
        %v509 = vtanh.pop %v505
        %v510 = vtanh.pop %v506
        %v511 = vadd.f32 %v507, 1.0
        %v512 = vadd.f32 %v508, 1.0
        %v513 = vadd.f32 %v509, 1.0
        %v514 = vadd.f32 %v510, 1.0
        %v515 = vmul.f32 %v483, %v511
        %v516 = vmul.f32 %v484, %v512
        %v517 = vmul.f32 %v485, %v513
        %v518 = vmul.f32 %v486, %v514
        %v519 = vld [vmem:[#allocation8] sm:$0xff]
        %v520 = vld [vmem:[#allocation8 + $0x8] sm:$0xff]
        %v521 = vld [vmem:[#allocation8 + $0x10] sm:$0xff]
        %v522 = vld [vmem:[#allocation8 + $0x18] sm:$0xff]
        %v523 = vld [vmem:[#allocation8 + $0x20] sm:$0xff]
        %v524 = vld [vmem:[#allocation8 + $0x28] sm:$0xff]
        %v525 = vld [vmem:[#allocation8 + $0x30] sm:$0xff]
        %v526 = vld [vmem:[#allocation8 + $0x38] sm:$0xff]
        %v527 = vld [vmem:[#allocation8 + $0x40] sm:$0xff]
        %v528 = vld [vmem:[#allocation8 + $0x48] sm:$0xff]
        %v529 = vld [vmem:[#allocation8 + $0x50] sm:$0xff]
        %v530 = vld [vmem:[#allocation8 + $0x58] sm:$0xff]
        %v531 = vld [vmem:[#allocation8 + $0x60] sm:$0xff]
        %v532 = vld [vmem:[#allocation8 + $0x68] sm:$0xff]
        %v533 = vld [vmem:[#allocation8 + $0x70] sm:$0xff]
        %v534 = vld [vmem:[#allocation8 + $0x78] sm:$0xff]
        %v535 = vld [vmem:[#allocation8 + $0x80] sm:$0xff]
        %v536 = vld [vmem:[#allocation8 + $0x88] sm:$0xff]
        %v537 = vld [vmem:[#allocation8 + $0x90] sm:$0xff]
        %v538 = vld [vmem:[#allocation8 + $0x98] sm:$0xff]
        %v539 = vld [vmem:[#allocation8 + $0xa0] sm:$0xff]
        %v540 = vld [vmem:[#allocation8 + $0xa8] sm:$0xff]
        %v541 = vld [vmem:[#allocation8 + $0xb0] sm:$0xff]
        %v542 = vld [vmem:[#allocation8 + $0xb8] sm:$0xff]
        %v543 = vld [vmem:[#allocation8 + $0xc0] sm:$0xff]
        %v544 = vld [vmem:[#allocation8 + $0xc8] sm:$0xff]
        %v545 = vld [vmem:[#allocation8 + $0xd0] sm:$0xff]
        %v546 = vld [vmem:[#allocation8 + $0xd8] sm:$0xff]
        %v547 = vld [vmem:[#allocation8 + $0xe0] sm:$0xff]
        %v548 = vld [vmem:[#allocation8 + $0xe8] sm:$0xff]
        %v549 = vld [vmem:[#allocation8 + $0xf0] sm:$0xff]
        %v550 = vld [vmem:[#allocation8 + $0xf8] sm:$0xff]
        %v551 = vld [vmem:[#allocation8 + $0x100] sm:$0xff]
        %v552 = vld [vmem:[#allocation8 + $0x108] sm:$0xff]
        %v553 = vld [vmem:[#allocation8 + $0x110] sm:$0xff]
        %v554 = vld [vmem:[#allocation8 + $0x118] sm:$0xff]
        %v555 = vld [vmem:[#allocation8 + $0x120] sm:$0xff]
        %v556 = vld [vmem:[#allocation8 + $0x128] sm:$0xff]
        %v557 = vld [vmem:[#allocation8 + $0x130] sm:$0xff]
        %v558 = vld [vmem:[#allocation8 + $0x138] sm:$0xff]
        %v559 = vld [vmem:[#allocation8 + $0x140] sm:$0xff]
        %v560 = vld [vmem:[#allocation8 + $0x148] sm:$0xff]
        %v561 = vld [vmem:[#allocation8 + $0x150] sm:$0xff]
        %v562 = vld [vmem:[#allocation8 + $0x158] sm:$0xff]
        %v563 = vld [vmem:[#allocation8 + $0x160] sm:$0xff]
        %v564 = vld [vmem:[#allocation8 + $0x168] sm:$0xff]
        %v565 = vld [vmem:[#allocation8 + $0x170] sm:$0xff]
        %v566 = vld [vmem:[#allocation8 + $0x178] sm:$0xff]
        %v567 = vld [vmem:[#allocation8 + $0x180] sm:$0xff]
        %v568 = vld [vmem:[#allocation8 + $0x188] sm:$0xff]
        %v569 = vld [vmem:[#allocation8 + $0x190] sm:$0xff]
        %v570 = vld [vmem:[#allocation8 + $0x198] sm:$0xff]
        %v571 = vld [vmem:[#allocation8 + $0x1a0] sm:$0xff]
        %v572 = vld [vmem:[#allocation8 + $0x1a8] sm:$0xff]
        %v573 = vld [vmem:[#allocation8 + $0x1b0] sm:$0xff]
        %v574 = vld [vmem:[#allocation8 + $0x1b8] sm:$0xff]
        %v575 = vld [vmem:[#allocation8 + $0x1c0] sm:$0xff]
        %v576 = vld [vmem:[#allocation8 + $0x1c8] sm:$0xff]
        %v577 = vld [vmem:[#allocation8 + $0x1d0] sm:$0xff]
        %v578 = vld [vmem:[#allocation8 + $0x1d8] sm:$0xff]
        %v579 = vld [vmem:[#allocation8 + $0x1e0] sm:$0xff]
        %v580 = vld [vmem:[#allocation8 + $0x1e8] sm:$0xff]
        %v581 = vld [vmem:[#allocation8 + $0x1f0] sm:$0xff]
        %v582 = vld [vmem:[#allocation8 + $0x1f8] sm:$0xff]
        %583 = vmatpush.msra.mxu0 %v534
        %584 = vmatpush.msra.mxu0 %v533
        %585 = vmatpush.msra.mxu0 %v532
        %586 = vmatpush.msra.mxu0 %v531
        %587 = vmatpush.msra.mxu0 %v530
        %588 = vmatpush.msra.mxu0 %v529
        %589 = vmatpush.msra.mxu0 %v528
        %590 = vmatpush.msra.mxu0 %v527
        %591 = vmatpush.msra.mxu0 %v526
        %592 = vmatpush.msra.mxu0 %v525
        %593 = vmatpush.msra.mxu0 %v524
        %594 = vmatpush.msra.mxu0 %v523
        %595 = vmatpush.msra.mxu0 %v522
        %596 = vmatpush.msra.mxu0 %v521
        %597 = vmatpush.msra.mxu0 %v520
        %598 = vmatpush.msra.mxu0 %v519
        %599 = vmatmul.f32.gmra.mxu0 %v515
        %v600 = vpop.f32.mrf.mxu0
        %v601 = vadd.f32 0.0, %v600
        %602 = vdwg.mxu0
        %603 = vmatpush.msra.mxu0 %v550
        %604 = vmatpush.msra.mxu0 %v549
        %605 = vmatpush.msra.mxu0 %v548
        %606 = vmatpush.msra.mxu0 %v547
        %607 = vmatpush.msra.mxu0 %v546
        %608 = vmatpush.msra.mxu0 %v545
        %609 = vmatpush.msra.mxu0 %v544
        %610 = vmatpush.msra.mxu0 %v543
        %611 = vmatpush.msra.mxu0 %v542
        %612 = vmatpush.msra.mxu0 %v541
        %613 = vmatpush.msra.mxu0 %v540
        %614 = vmatpush.msra.mxu0 %v539
        %615 = vmatpush.msra.mxu0 %v538
        %616 = vmatpush.msra.mxu0 %v537
        %617 = vmatpush.msra.mxu0 %v536
        %618 = vmatpush.msra.mxu0 %v535
        %619 = vmatmul.f32.gmra.mxu0 %v516
        %v620 = vpop.f32.mrf.mxu0
        %v621 = vadd.f32 %v601, %v620
        %622 = vdwg.mxu0
        %623 = vmatpush.msra.mxu0 %v566
        %624 = vmatpush.msra.mxu0 %v565
        %625 = vmatpush.msra.mxu0 %v564
        %626 = vmatpush.msra.mxu0 %v563
        %627 = vmatpush.msra.mxu0 %v562
        %628 = vmatpush.msra.mxu0 %v561
        %629 = vmatpush.msra.mxu0 %v560
        %630 = vmatpush.msra.mxu0 %v559
        %631 = vmatpush.msra.mxu0 %v558
        %632 = vmatpush.msra.mxu0 %v557
        %633 = vmatpush.msra.mxu0 %v556
        %634 = vmatpush.msra.mxu0 %v555
        %635 = vmatpush.msra.mxu0 %v554
        %636 = vmatpush.msra.mxu0 %v553
        %637 = vmatpush.msra.mxu0 %v552
        %638 = vmatpush.msra.mxu0 %v551
        %639 = vmatmul.f32.gmra.mxu0 %v517
        %v640 = vpop.f32.mrf.mxu0
        %v641 = vadd.f32 %v621, %v640
        %642 = vdwg.mxu0
        %643 = vmatpush.msra.mxu0 %v582
        %644 = vmatpush.msra.mxu0 %v581
        %645 = vmatpush.msra.mxu0 %v580
        %646 = vmatpush.msra.mxu0 %v579
        %647 = vmatpush.msra.mxu0 %v578
        %648 = vmatpush.msra.mxu0 %v577
        %649 = vmatpush.msra.mxu0 %v576
        %650 = vmatpush.msra.mxu0 %v575
        %651 = vmatpush.msra.mxu0 %v574
        %652 = vmatpush.msra.mxu0 %v573
        %653 = vmatpush.msra.mxu0 %v572
        %654 = vmatpush.msra.mxu0 %v571
        %655 = vmatpush.msra.mxu0 %v570
        %656 = vmatpush.msra.mxu0 %v569
        %657 = vmatpush.msra.mxu0 %v568
        %658 = vmatpush.msra.mxu0 %v567
        %659 = vmatmul.f32.gmra.mxu0 %v518
        %v660 = vpop.f32.mrf.mxu0
        %v661 = vadd.f32 %v641, %v660
        %662 = vdwg.mxu0
        %p663 = scmp.eq.s32.totalorder %s29, 0
        // Predicated region
        $region57: #{tpu_custom_call.1} parent=39 // pred_check
          %p664 = pneg %p663
        $region58: #{tpu_custom_call.1} parent=39 // pred_check_branch
          %666 = sbr.rel (%p664) target = $region60
        $region59: #{tpu_custom_call.1} parent=39 // pred_region
          %v667 = vld [vmem:[%s4] sm:$0x1]
          %v669 = vperm.slane %v667, 0
          %v671 = vadd.f32 %v661, %v669
          %672 = vst [vmem:[%s324] sm:$0xff] %v671
        $region60: #{tpu_custom_call.1} parent=39 // pred_fallthru
          _
        %p673 = scmp.gt.s32.totalorder %s29, 0
        // Predicated region
        $region61: #{tpu_custom_call.1} parent=39 // pred_check
          %p674 = pneg %p673
        $region62: #{tpu_custom_call.1} parent=39 // pred_check_branch
          %676 = sbr.rel (%p674) target = $region64
        $region63: #{tpu_custom_call.1} parent=39 // pred_region
          %v677 = vld [vmem:[%s324] sm:$0xff]
          %v678 = vadd.f32 %v677, %v661
          %679 = vst [vmem:[%s324] sm:$0xff] %v678
        $region64: #{tpu_custom_call.1} parent=39 // pred_fallthru
          _
        %s680 = sand.u32 %s169, 1
        %s681 = scalar_lea.sflag [#allocation4], %s680
        %s682 = sand.u32 %s169, 1
        %s683 = smul.addr %s682, 8
        %s684 = scalar_lea.vmem [#allocation10], %s683
        // Predicated region
        $region65: #{tpu_custom_call.1} parent=39 // pred_check
          %p685 = pneg %p179
        $region66: #{tpu_custom_call.1} parent=39 // pred_check_branch
          %687 = sbr.rel (%p685) target = $region68
        $region67: #{tpu_custom_call.1} parent=39 // pred_region
          %689 = vsyncadd %s681, 0
          %s690 = smul.addr %s28, 8
          %s691 = scalar_lea.hbm %s5, %s690
          %s693 = sshll.u32 %s684, 4
          %s694 = int_to_ptr.vmem [resolvable:$true] %s693
          %s695 = sshll.u32 %s691, 4
          %s696 = int_to_ptr.hbm [resolvable:$true] %s695
          %698 = dma.vmem_to_hbm [thread:$0]  %s694, 128, %s696, %s681
        $region68: #{tpu_custom_call.1} parent=39 // pred_fallthru
          _
      $region40: #{tpu_custom_call.1} parent=5 // pred_fallthru
        _
      %p699 = scmp.le.s32.totalorder 2, %s19
      // Predicated region
      $region69: #{tpu_custom_call.1} parent=5 // pred_check
        %p700 = pneg %p699
      $region70: #{tpu_custom_call.1} parent=5 // pred_check_branch
        %702 = sbr.rel (%p700) target = $region72
      $region71: #{tpu_custom_call.1} parent=5 // pred_region
        %s703 = ssub.s32 %s19, 2
        // Predicated region
        $region73: #{tpu_custom_call.1} parent=71 // pred_check
          %p704 = pneg %p185
        $region74: #{tpu_custom_call.1} parent=71 // pred_check_branch
          %706 = sbr.rel (%p704) target = $region76
        $region75: #{tpu_custom_call.1} parent=71 // pred_region
          %s707 = sand.u32 %s170, 1
          %s708 = scalar_lea.sflag [#allocation4], %s707
          %s709 = sand.u32 %s170, 1
          %s710 = smul.addr %s709, 8
          %s711 = scalar_lea.vmem [#allocation10], %s710
          %713 = dma.done %s708, 128
        $region76: #{tpu_custom_call.1} parent=71 // pred_fallthru
          _
      $region72: #{tpu_custom_call.1} parent=5 // pred_fallthru
        _
    $region6: #{tpu_custom_call.1} parent=1 // loop_footer
      %s23 = sadd.s32 1, %s19
    $region7: #{tpu_custom_call.1} parent=1 // loop_footer_branch
      %18 = sbr.rel target = $region3
    $region8: #{tpu_custom_call.1} parent=1 // loop_exit
      _
    %714 = vsyncpa [#allocation3], 1
    %s715 = scalar_lea.sflag [#allocation3], 1
    %716 = vsyncpa %s715, 1
    %717 = vsyncpa [#allocation6], 1
    %718 = vsyncpa [#allocation9], 1
    %719 = vsyncpa [#allocation4], 1
    %s720 = scalar_lea.sflag [#allocation4], 1
    %721 = vsyncpa %s720, 1

</llo_original>
